<compile_context>
chip_gen: v5e
topology: v5e:2x2
jax: 0.10.0
libtpu: 0.0.40
codegen_flags: <defaults>
</compile_context>

<pallas_src>
import functools

import numpy as np
import jax
import jax.numpy as jnp
from jax.experimental import pallas as pl
from jax.experimental.pallas import tpu as pltpu

N_EXPERTS = 4
PHASE_STEP = 0.1

# Target packed-rows per grid step (sweepable). With PACK=16 / obs=16 / act=8
# this is ~1.5 MB of HBM traffic and ~3 MB of double-buffered VMEM per step.
_TARGET_TBP = 1024
_VMEM_TILE_BUDGET = 8 << 20  # double-buffered x+out tiles, bytes


def _round_up(n, m):
    return ((n + m - 1) // m) * m


def _select_pack(obs_dim, act_dim):
    """How many logical rows to pack into one lane-dense kernel row."""
    # Prefer a lane-dense (multiple of 128) packed OUTPUT, then packed input.
    for p in (16, 8, 4, 2):
        if (p * act_dim) % 128 == 0 and p * obs_dim <= 1024 and p * act_dim <= 1024:
            return p
    for p in (16, 8, 4, 2):
        if (p * obs_dim) % 128 == 0 and p * obs_dim <= 1024 and p * act_dim <= 1024:
            return p
    return 1  # fall back to un-packed layout


def _baseline_kernel(a_ref, x_ref, out_ref):
    # a_ref  : VMEM (Kp, Np) f32  -- block-diag mixed expert matrix (resident)
    # x_ref  : VMEM (tbp, Kp)     -- packed input rows (pipelined over batch)
    # out_ref: VMEM (tbp, Np) f32 -- packed output rows
    #
    # Torch parity: x.float() @ A with A kept in f32, f32 MXU accumulation.
    x = x_ref[...].astype(jnp.float32)
    out_ref[...] = jnp.dot(x, a_ref[...], preferred_element_type=jnp.float32)


@functools.partial(jax.jit, static_argnames=("pack", "tbp"))
def _forward_jit(phase, x, experts, pack, tbp):
    batch, obs_dim = x.shape
    _, _, act_dim_p1 = experts.shape
    act_dim = act_dim_p1 - 1

    # Scalar mixing coefficients from the (traced) phase -> no recompiles as
    # the phase advances.
    idx = jnp.arange(N_EXPERTS, dtype=jnp.float32) * jnp.float32(np.pi / 4.0)
    coeffs = jnp.clip(jnp.cos(jnp.abs(phase - idx)), 0.0, 1.0)

    # Mix experts and drop the pred_step column BEFORE anything reaches the
    # kernel/MXU; XLA fuses this tiny einsum with the cos/clip above.
    a = jnp.einsum("e,eij->ij", coeffs, experts.astype(jnp.float32))
    a = a[:, :act_dim]                                        # (obs, act), f32
    # Block-diagonal replication so x / out are lane-dense slabs in the kernel.
    a_blk = jnp.kron(jnp.eye(pack, dtype=jnp.float32), a)     # (pack*obs, pack*act)
    kp, npk = a_blk.shape

    # Pad the batch so packed rows are a multiple of 8 sublanes; padded rows
    # only produce rows that are sliced off below.
    batch_pad = _round_up(batch, pack * 8)
    if batch_pad != batch:
        x = jnp.pad(x, ((0, batch_pad - batch), (0, 0)))
    bp = batch_pad // pack
    x_packed = x.reshape(bp, kp)                               # free row-major view

    grid = (pl.cdiv(bp, tbp),)
    cost = pl.CostEstimate(
        flops=2 * bp * kp * npk,
        transcendentals=0,
        bytes_accessed=bp * (kp * x.dtype.itemsize + npk * 4) + kp * npk * 4,
    )

    out_packed = pl.pallas_call(
        _baseline_kernel,
        out_shape=jax.ShapeDtypeStruct((bp, npk), jnp.float32),
        grid=grid,
        in_specs=[
            # Mixed weight slab: tiny, stays resident across all grid steps.
            pl.BlockSpec((kp, npk), lambda i: (0, 0)),
            # Packed inputs: tiled over batch -> auto double-buffered DMA.
            pl.BlockSpec((tbp, kp), lambda i: (i, 0)),
        ],
        out_specs=pl.BlockSpec((tbp, npk), lambda i: (i, 0)),
        compiler_params=pltpu.CompilerParams(
            # Batch tiles are independent: shard across TensorCores on v7x.
            dimension_semantics=("parallel",),
        ),
        cost_estimate=cost,
    )(a_blk, x_packed)

    out = out_packed.reshape(batch_pad, act_dim)[:batch]       # free view + slice
    new_phase = (phase + jnp.float32(PHASE_STEP)) % jnp.float32(2.0 * np.pi)
    return out, new_phase


def baseline_forward(x, experts, phase=0.0):
    """x: (batch, obs_dim) any float dtype; experts: (4, obs_dim, act_dim+1) f32.

    Returns (out[:, :act_dim], new_phase) -- the phase update is returned
    functionally instead of mutating module state.
    """
    batch, obs_dim = x.shape
    act_dim = experts.shape[-1] - 1

    pack = _select_pack(obs_dim, act_dim)
    kp = pack * obs_dim
    npk = pack * act_dim
    bp = _round_up(batch, pack * 8) // pack

    # Tile size in packed rows, sized with lane-padding-aware VMEM math:
    # double-buffered x+out tiles must stay under the budget (safe on v5e's
    # 16 MiB scoped default, v6e/v7x 32 MiB).
    row_bytes = 4 * (_round_up(kp, 128) + _round_up(npk, 128))
    tbp_cap = max(8, (_VMEM_TILE_BUDGET // (2 * row_bytes)) // 8 * 8)
    tbp = min(_TARGET_TBP, tbp_cap)
    if bp >= 16:
        # Guarantee >=2 grid steps so the "parallel" axis feeds both TCs (v7x).
        tbp = min(tbp, _round_up(pl.cdiv(bp, 2), 8))
    tbp = max(8, min(tbp, bp))

    phase = jnp.asarray(phase, dtype=jnp.float32)
    return _forward_jit(phase, x, experts, pack, tbp)


def baseline_reference(x, experts, phase=0.0):
    """Pure-JAX reference mirroring the PyTorch forward."""
    coeffs = np.clip(
        np.cos(np.abs(float(phase) - np.arange(N_EXPERTS) * (np.pi / 4.0))), 0.0, 1.0
    ).astype(np.float32)
    a = jnp.einsum("e,eij->ij", jnp.asarray(coeffs), experts.astype(jnp.float32))
    y = x.astype(jnp.float32) @ a
    return y[:, :-1]


if __name__ == "__main__":
    # Small, module-consistent shapes: batch=64, obs_dim=16, act_dim=8.
    batch, obs_dim, act_dim = 64, 16, 8

    key = jax.random.PRNGKey(0)
    kx, kw = jax.random.split(key)
    x = jax.random.normal(kx, (batch, obs_dim), dtype=jnp.float32)
    # Deterministic stand-in for the 4 nn.Parameter(T.randn(obs_dim, act_dim+1)) experts.
    experts = jax.random.normal(
        kw, (N_EXPERTS, obs_dim, act_dim + 1), dtype=jnp.float32
    )

    out, new_phase = baseline_forward(x, experts, phase=0.0)
    out = jax.block_until_ready(out)

    ref = jax.block_until_ready(baseline_reference(x, experts, phase=0.0))
    assert out.shape == (batch, act_dim)
    np.testing.assert_allclose(np.asarray(out), np.asarray(ref), rtol=1e-5, atol=1e-5)

    # Second step with the updated (traced) phase -- exercises the jitted
    # coeff path without recompilation.
    out2, _ = baseline_forward(x, experts, phase=new_phase)
    out2 = jax.block_until_ready(out2)
    ref2 = jax.block_until_ready(
        baseline_reference(x, experts, phase=float(new_phase))
    )
    np.testing.assert_allclose(np.asarray(out2), np.asarray(ref2), rtol=1e-5, atol=1e-5)

    print("KERNEL_OK")
</pallas_src>

<mosaic_0001>
module attributes {stable_mosaic.version = 11 : i64} {
  func.func @_baseline_kernel(%arg0: i32, %arg1: memref<256x128xf32, #tpu.memory_space<vmem>>, %arg2: memref<8x256xf32, #tpu.memory_space<vmem>>, %arg3: memref<8x128xf32, #tpu.memory_space<vmem>>) attributes {dimension_semantics = [#tpu.dimension_semantics<parallel>], iteration_bounds = array<i64: 1>, scalar_prefetch = 0 : i64, scratch_operands = 0 : i64, tpu.core_type = #tpu.core_type<tc>, window_params = [{pipeline_mode = #tpu.pipeline_mode<synchronous>, transform_indices = @transform_0, window_bounds = array<i64: 256, 128>}, {transform_indices = @transform_1, window_bounds = array<i64: 8, 256>}, {transform_indices = @transform_2, window_bounds = array<i64: 8, 128>}]} {
    %c0 = arith.constant 0 : index
    %c0_0 = arith.constant 0 : index
    %0 = vector.load %arg2[%c0, %c0_0] : memref<8x256xf32, #tpu.memory_space<vmem>>, vector<8x256xf32>
    %c0_1 = arith.constant 0 : index
    %c0_2 = arith.constant 0 : index
    %1 = vector.load %arg1[%c0_1, %c0_2] : memref<256x128xf32, #tpu.memory_space<vmem>>, vector<256x128xf32>
    %cst = arith.constant dense<0.000000e+00> : vector<8x128xf32>
    %2 = tpu.matmul %0, %1, %cst {dimension_numbers = #tpu.dot_dimension_numbers<[1], [0], [0], [1], [0, 0, 1, 1], [], []>} : vector<8x256xf32>, vector<256x128xf32>, vector<8x128xf32> -> vector<8x128xf32>
    %c0_3 = arith.constant 0 : index
    %c0_4 = arith.constant 0 : index
    %3 = vector.load %arg3[%c0_3, %c0_4] : memref<8x128xf32, #tpu.memory_space<vmem>>, vector<8x128xf32>
    tpu.vector_store %arg3[%c0_3, %c0_4], %2 {strides = array<i32>} : memref<8x128xf32, #tpu.memory_space<vmem>>, vector<8x128xf32>,
    return
  }
  func.func @transform_0(%arg0: i32) -> (i32, i32) {
    %c0_i32 = arith.constant 0 : i32
    %c0_i32_0 = arith.constant 0 : i32
    %c0_i32_1 = arith.constant 0 : i32
    return %c0_i32, %c0_i32_0 : i32, i32
  }
  func.func @transform_1(%arg0: i32) -> (i32, i32) {
    %c0_i32 = arith.constant 0 : i32
    %c0_i32_0 = arith.constant 0 : i32
    return %arg0, %c0_i32 : i32, i32
  }
  func.func @transform_2(%arg0: i32) -> (i32, i32) {
    %c0_i32 = arith.constant 0 : i32
    %c0_i32_0 = arith.constant 0 : i32
    return %arg0, %c0_i32 : i32, i32
  }
}

</mosaic_0001>

<llo_original>
// kernel: _forward_jit.1
$region0: #{_forward_jit.1}
  #allocation0 [shape = 'u32[]', space=smem, size = 0x4, offset = 0x4, fixed_abs, tag = 'smem constant byte address 0x4 - core index']
  #allocation1 [shape = 'u32[72,128]{1,0:T(1,128)}', space=vmem, size = 0x9000, scoped, tag = 'internal scratch']
  %s0 = inlined_call_operand.vmem [shape: f32[256,128], index: 0, kind: input, shape index: {}]
  %s1 = inlined_call_operand.vmem [shape: f32[8,256], index: 1, kind: input, shape index: {}]
  %s2 = inlined_call_operand.vmem [shape: f32[8,128], index: 2, kind: output, shape index: {}]
  %s3 = sld [smem:[#allocation0]]
  $region18: #{_forward_jit.1} parent=0
    _
  %s5 = ssub.s32 1, %s3
  %s6 = scalar_select 0, %s5, %s3
  // Predicated region
  $region2: #{_forward_jit.1} parent=0 // pred_check
    _
  $region3: #{_forward_jit.1} parent=0 // pred_check_branch
    %8 = sbr.rel (0) target = $region5
  $region4: #{_forward_jit.1} parent=0 // pred_region
    _
  $region5: #{_forward_jit.1} parent=0 // pred_fallthru
    _
  // Predicated region
  $region6: #{_forward_jit.1} parent=0 // pred_check
    _
  $region7: #{_forward_jit.1} parent=0 // pred_check_branch
    %10 = sbr.rel (0) target = $region9
  $region8: #{_forward_jit.1} parent=0 // pred_region
    _
  $region9: #{_forward_jit.1} parent=0 // pred_fallthru
    _
  %v11 = vld [vmem:[%s1] sm:$0xff]
  %v12 = vld [vmem:[%s1 + $0x8] sm:$0xff]
  %v13 = vld [vmem:[%s0] sm:$0xff]
  %v14 = vld [vmem:[%s0 + $0x8] sm:$0xff]
  %v15 = vld [vmem:[%s0 + $0x10] sm:$0xff]
  %v16 = vld [vmem:[%s0 + $0x18] sm:$0xff]
  %v17 = vld [vmem:[%s0 + $0x20] sm:$0xff]
  %v18 = vld [vmem:[%s0 + $0x28] sm:$0xff]
  %v19 = vld [vmem:[%s0 + $0x30] sm:$0xff]
  %v20 = vld [vmem:[%s0 + $0x38] sm:$0xff]
  %v21 = vld [vmem:[%s0 + $0x40] sm:$0xff]
  %v22 = vld [vmem:[%s0 + $0x48] sm:$0xff]
  %v23 = vld [vmem:[%s0 + $0x50] sm:$0xff]
  %v24 = vld [vmem:[%s0 + $0x58] sm:$0xff]
  %v25 = vld [vmem:[%s0 + $0x60] sm:$0xff]
  %v26 = vld [vmem:[%s0 + $0x68] sm:$0xff]
  %v27 = vld [vmem:[%s0 + $0x70] sm:$0xff]
  %v28 = vld [vmem:[%s0 + $0x78] sm:$0xff]
  %v29 = vld [vmem:[%s0 + $0x80] sm:$0xff]
  %v30 = vld [vmem:[%s0 + $0x88] sm:$0xff]
  %v31 = vld [vmem:[%s0 + $0x90] sm:$0xff]
  %v32 = vld [vmem:[%s0 + $0x98] sm:$0xff]
  %v33 = vld [vmem:[%s0 + $0xa0] sm:$0xff]
  %v34 = vld [vmem:[%s0 + $0xa8] sm:$0xff]
  %v35 = vld [vmem:[%s0 + $0xb0] sm:$0xff]
  %v36 = vld [vmem:[%s0 + $0xb8] sm:$0xff]
  %v37 = vld [vmem:[%s0 + $0xc0] sm:$0xff]
  %v38 = vld [vmem:[%s0 + $0xc8] sm:$0xff]
  %v39 = vld [vmem:[%s0 + $0xd0] sm:$0xff]
  %v40 = vld [vmem:[%s0 + $0xd8] sm:$0xff]
  %v41 = vld [vmem:[%s0 + $0xe0] sm:$0xff]
  %v42 = vld [vmem:[%s0 + $0xe8] sm:$0xff]
  %v43 = vld [vmem:[%s0 + $0xf0] sm:$0xff]
  %v44 = vld [vmem:[%s0 + $0xf8] sm:$0xff]
  %45 = vmatpush.msra.mxu0 %v28
  %46 = vmatpush.msra.mxu0 %v27
  %47 = vmatpush.msra.mxu0 %v26
  %48 = vmatpush.msra.mxu0 %v25
  %49 = vmatpush.msra.mxu0 %v24
  %50 = vmatpush.msra.mxu0 %v23
  %51 = vmatpush.msra.mxu0 %v22
  %52 = vmatpush.msra.mxu0 %v21
  %53 = vmatpush.msra.mxu0 %v20
  %54 = vmatpush.msra.mxu0 %v19
  %55 = vmatpush.msra.mxu0 %v18
  %56 = vmatpush.msra.mxu0 %v17
  %57 = vmatpush.msra.mxu0 %v16
  %58 = vmatpush.msra.mxu0 %v15
  %59 = vmatpush.msra.mxu0 %v14
  %60 = vmatpush.msra.mxu0 %v13
  %61 = vmatmul.f32.gmra.mxu0 %v11
  %v62 = vpop.f32.mrf.mxu0
  %v63 = vadd.f32 0.0, %v62
  %64 = vdwg.mxu0
  %65 = vmatpush.msra.mxu0 %v44
  %66 = vmatpush.msra.mxu0 %v43
  %67 = vmatpush.msra.mxu0 %v42
  %68 = vmatpush.msra.mxu0 %v41
  %69 = vmatpush.msra.mxu0 %v40
  %70 = vmatpush.msra.mxu0 %v39
  %71 = vmatpush.msra.mxu0 %v38
  %72 = vmatpush.msra.mxu0 %v37
  %73 = vmatpush.msra.mxu0 %v36
  %74 = vmatpush.msra.mxu0 %v35
  %75 = vmatpush.msra.mxu0 %v34
  %76 = vmatpush.msra.mxu0 %v33
  %77 = vmatpush.msra.mxu0 %v32
  %78 = vmatpush.msra.mxu0 %v31
  %79 = vmatpush.msra.mxu0 %v30
  %80 = vmatpush.msra.mxu0 %v29
  %81 = vmatmul.f32.gmra.mxu0 %v12
  %v82 = vpop.f32.mrf.mxu0
  %v83 = vadd.f32 %v63, %v82
  %84 = vdwg.mxu0
  %85 = vst [vmem:[%s2] sm:$0xff] %v83
  // Predicated region
  $region10: #{_forward_jit.1} parent=0 // pred_check
    _
  $region11: #{_forward_jit.1} parent=0 // pred_check_branch
    %87 = sbr.rel (0) target = $region13
  $region12: #{_forward_jit.1} parent=0 // pred_region
    _
  $region13: #{_forward_jit.1} parent=0 // pred_fallthru
    _
  // Predicated region
  $region14: #{_forward_jit.1} parent=0 // pred_check
    _
  $region15: #{_forward_jit.1} parent=0 // pred_check_branch
    %89 = sbr.rel (0) target = $region17
  $region16: #{_forward_jit.1} parent=0 // pred_region
    _
  $region17: #{_forward_jit.1} parent=0 // pred_fallthru
    _

</llo_original>
